<compile_context>
chip_gen: v7x
topology: tpu7x:2x2x1
jax: 0.10.0
libtpu: 0.0.40
codegen_flags: <defaults>
</compile_context>

<pallas_src>
import functools

import jax
import jax.numpy as jnp
from jax import lax
from jax.experimental import pallas as pl
from jax.experimental.pallas import tpu as pltpu


# --------------------------------------------------------------------------- #
# Helpers
# --------------------------------------------------------------------------- #
def _round_up(x, n):
    return -(-x // n) * n


def _vmem_capacity_bytes():
    """Physical per-core VMEM; conservative 64 MiB (v7x) fallback if unknown."""
    try:
        info = pltpu.get_tpu_info()
        for name in ("vmem_capacity_bytes", "vmem_bytes", "vmem_capacity"):
            cap = getattr(info, name, None)
            if cap:
                return int(cap)
    except Exception:
        pass
    return 64 << 20


def _largest_divisor_tile(m8, cap):
    """Largest multiple-of-8 divisor of m8 that is <= cap (m8 % 8 == 0)."""
    best = 8
    d = 8
    limit = min(cap, m8)
    while d <= limit:
        if m8 % d == 0:
            best = d
        d += 8
    return best


def _vmem_limit(need_bytes, vmem_cap):
    """Scoped-VMEM hint: only raise above default, never above physical."""
    if need_bytes <= (12 << 20):
        return None
    return int(min(max(2 * need_bytes, need_bytes + (16 << 20)),
                   vmem_cap - (2 << 20)))


# --------------------------------------------------------------------------- #
# Kernels
# --------------------------------------------------------------------------- #
def _sigmoid(z):
    # EUP exp + EUP approximate reciprocal (error well below bf16 matmul err).
    return pl.reciprocal(1.0 + jnp.exp(-z), approx=True)


def _resident_kernel(x_ref, w_ref, b_ref, o_ref, *, hidden, num_layers):
    """Whole fused weight stack resident in VMEM; loop over layers in-kernel.

    x_ref : (TM, H)          activation tile, f32
    w_ref : (L, H, 2*Hp)     fused [Wt | Wg] weights, bf16, (in, out) layout
    b_ref : (L, 1, 2*Hp)     fused [bt | bg] biases, f32
    o_ref : (TM, H)          output tile, f32
    (Hp = H rounded up to a lane multiple; padded output columns are never read.)
    """
    hp = w_ref.shape[2] // 2

    def layer_body(l, x):
        # One fused MXU matmul per layer: y = x @ [Wt | Wg]  -> (TM, 2*Hp)
        y = jnp.dot(x.astype(jnp.bfloat16), w_ref[l],
                    preferred_element_type=jnp.float32) + b_ref[l]
        t = jnp.maximum(y[:, :hidden], 0.0)            # relu(transform)
        g = _sigmoid(y[:, hp:hp + hidden])             # sigmoid(gate), lane-aligned start
        return g * (t - x) + x                         # == g*t + (1-g)*x

    x0 = x_ref[...].astype(jnp.float32)
    out = lax.fori_loop(0, num_layers, layer_body, x0,
                        unroll=(num_layers <= 4))
    o_ref[...] = out.astype(o_ref.dtype)


def _streaming_kernel(x_ref, w_ref, b_ref, o_ref, x_carry, *, hidden):
    """One layer per grid step; weights streamed one (H, 2*Hp) slab at a time.

    grid = (row_tiles, layers); layers axis is "arbitrary" (sequential carry).
    """
    hp = w_ref.shape[2] // 2
    l = pl.program_id(1)

    @pl.when(l == 0)
    def _():
        x_carry[...] = x_ref[...].astype(jnp.float32)

    x = x_carry[...]
    y = jnp.dot(x.astype(jnp.bfloat16), w_ref[0],
                preferred_element_type=jnp.float32) + b_ref[0]
    t = jnp.maximum(y[:, :hidden], 0.0)
    g = _sigmoid(y[:, hp:hp + hidden])
    x_new = g * (t - x) + x
    x_carry[...] = x_new

    @pl.when(l == pl.num_programs(1) - 1)
    def _():
        o_ref[...] = x_new.astype(o_ref.dtype)


# --------------------------------------------------------------------------- #
# pallas_call builder (cached per static config)
# --------------------------------------------------------------------------- #
@functools.lru_cache(maxsize=None)
def _build_call(num_layers, hidden, hp, m_pad, tm, use_resident,
                single_buffer_weights, vmem_limit_bytes):
    grid_rows = m_pad // tm

    cp_kwargs = {}
    if vmem_limit_bytes is not None:
        cp_kwargs["vmem_limit_bytes"] = int(vmem_limit_bytes)

    cost = pl.CostEstimate(
        flops=int(4 * num_layers * m_pad * hidden * hp),
        transcendentals=int(num_layers * m_pad * hidden),
        bytes_accessed=int(2 * m_pad * hidden * 4
                           + num_layers * hidden * 2 * hp * 2
                           + num_layers * 2 * hp * 4),
    )

    if use_resident:
        w_kwargs = {}
        if single_buffer_weights:
            # Grid-invariant operands: one VMEM buffer is enough (halves
            # the resident weight footprint vs default double-buffering).
            w_kwargs["pipeline_mode"] = pl.Buffered(1)
        grid = (grid_rows,)
        in_specs = [
            pl.BlockSpec((tm, hidden), lambda i: (i, 0)),
            pl.BlockSpec((num_layers, hidden, 2 * hp), lambda i: (0, 0, 0),
                         **w_kwargs),
            pl.BlockSpec((num_layers, 1, 2 * hp), lambda i: (0, 0, 0),
                         **w_kwargs),
        ]
        out_specs = pl.BlockSpec((tm, hidden), lambda i: (i, 0))
        scratch_shapes = []
        kernel = functools.partial(_resident_kernel, hidden=hidden,
                                   num_layers=num_layers)
        dims = ("parallel",)
    else:
        grid = (grid_rows, num_layers)
        in_specs = [
            pl.BlockSpec((tm, hidden), lambda i, l: (i, 0)),
            pl.BlockSpec((1, hidden, 2 * hp), lambda i, l: (l, 0, 0)),
            pl.BlockSpec((1, 1, 2 * hp), lambda i, l: (l, 0, 0)),
        ]
        out_specs = pl.BlockSpec((tm, hidden), lambda i, l: (i, 0))
        scratch_shapes = [pltpu.VMEM((tm, hidden), jnp.float32)]
        kernel = functools.partial(_streaming_kernel, hidden=hidden)
        dims = ("parallel", "arbitrary")

    call = pl.pallas_call(
        kernel,
        out_shape=jax.ShapeDtypeStruct((m_pad, hidden), jnp.float32),
        grid_spec=pltpu.PrefetchScalarGridSpec(
            num_scalar_prefetch=0,
            grid=grid,
            in_specs=in_specs,
            out_specs=out_specs,
            scratch_shapes=scratch_shapes,
        ),
        compiler_params=pltpu.CompilerParams(
            dimension_semantics=dims, **cp_kwargs),
        cost_estimate=cost,
    )
    return jax.jit(call)


# --------------------------------------------------------------------------- #
# Public API
# --------------------------------------------------------------------------- #
def prepare_params(wt, bt, wg, bg):
    """One-time fuse + output-pad + bf16 cast of the highway parameters.

    Keep this OUT of the per-step hot path: call once and reuse the result.
    wt/wg are in (in, out) layout (PyTorch weight transposed).

    Only the OUTPUT dim of each half is zero-padded to Hp (lane multiple) so
    the fused matmul output / gate-half slice are lane aligned; the input dim
    stays at `hidden` so activations never need padding.
    """
    num_layers, hidden, _ = wt.shape
    hp = _round_up(hidden, 128)
    pad_h = hp - hidden
    if pad_h:
        wt = jnp.pad(wt, ((0, 0), (0, 0), (0, pad_h)))
        wg = jnp.pad(wg, ((0, 0), (0, 0), (0, pad_h)))
        bt = jnp.pad(bt, ((0, 0), (0, pad_h)))
        bg = jnp.pad(bg, ((0, 0), (0, pad_h)))
    w_fused = jnp.concatenate([wt, wg], axis=-1).astype(jnp.bfloat16)      # (L, H, 2Hp)
    b_fused = jnp.concatenate([bt, bg], axis=-1).reshape(
        num_layers, 1, 2 * hp).astype(jnp.float32)                         # (L, 1, 2Hp)
    return w_fused, b_fused


def highway_encoder(x, w_fused, b_fused, *, force_streaming=False):
    """Apply the highway encoder.

    x        : (batch, seq, hidden) float32
    w_fused  : (L, hidden, 2*Hp) bf16  from prepare_params
    b_fused  : (L, 1, 2*Hp)      f32   from prepare_params
    """
    batch, seq, hidden = x.shape
    num_layers, h_in, hp2 = w_fused.shape
    assert h_in == hidden
    hp = hp2 // 2
    assert hp == _round_up(hidden, 128)
    m = batch * seq

    # ---- VMEM budget (generation aware) -------------------------------------
    vmem_cap = _vmem_capacity_bytes()
    budget = max(vmem_cap - (8 << 20), 16 << 20)

    weight_bytes = num_layers * hidden * 2 * hp * 2       # bf16 fused weights
    bias_bytes = num_layers * 2 * hp * 4                  # f32 fused biases
    # Per-row VMEM: double-buffered f32 in/out tiles + y/t/g/carry/bf16 temps.
    per_row_bytes = 4 * (8 * hidden + 4 * hp)

    use_resident = (not force_streaming) and (
        weight_bytes + bias_bytes + 64 * per_row_bytes <= budget)
    if use_resident:
        fixed_single = weight_bytes + bias_bytes           # Buffered(1) weights
        fixed_double = 2 * (weight_bytes + bias_bytes)     # fallback buffering
    else:
        # one (H, 2Hp) bf16 slab + bias slab, double-buffered while streaming
        fixed_single = fixed_double = 2 * (hidden * 2 * hp * 2 + 2 * hp * 4)
    # TODO(synk): very large hidden (single weight slab > VMEM) would also need
    # K/N tiling of the per-layer matmul; not implemented here.

    # ---- row tiling ----------------------------------------------------------
    max_rows = max(8, (budget - fixed_single) // per_row_bytes)
    tm_cap = min(2048 if hp <= 512 else 512, (max_rows // 8) * 8)
    m8 = _round_up(m, 8)
    if m8 > 8:
        # Guarantee >= 2 grid steps (megacore sharding on v7x, DMA/compute overlap).
        tm_cap = min(tm_cap, max(8, 8 * (m8 // 16)))
    tm = _largest_divisor_tile(m8, tm_cap)
    m_pad = m8                                            # tm divides m8

    x2d = x.reshape(m, hidden).astype(jnp.float32)
    if m_pad != m:
        x2d = jnp.pad(x2d, ((0, m_pad - m), (0, 0)))

    # ---- run (with graceful fallback if single-buffering is rejected) -------
    def run(single_buffer):
        fixed = fixed_single if (use_resident and single_buffer) else fixed_double
        limit = _vmem_limit(fixed + tm * per_row_bytes, vmem_cap)
        fn = _build_call(num_layers, hidden, hp, m_pad, tm, use_resident,
                         bool(use_resident and single_buffer), limit)
        return fn(x2d, w_fused, b_fused)

    try:
        out2d = run(True)
    except Exception:
        out2d = run(False)     # default double-buffering of weights/biases

    if m_pad != m:
        out2d = out2d[:m]
    return out2d.reshape(batch, seq, hidden)


# --------------------------------------------------------------------------- #
# Params + references
# --------------------------------------------------------------------------- #
def init_params(key, num_layers, hidden_size):
    """Deterministic synthetic params mimicking nn.Linear init shapes.

    Weights are returned already transposed to (in, out) layout so the kernel
    can do x @ W directly (PyTorch Linear stores (out, in) and does x @ W.T).
    """
    bound = 1.0 / jnp.sqrt(hidden_size)
    keys = jax.random.split(key, 4)
    wt = jax.random.uniform(keys[0], (num_layers, hidden_size, hidden_size),
                            minval=-bound, maxval=bound, dtype=jnp.float32)
    bt = jax.random.uniform(keys[1], (num_layers, hidden_size),
                            minval=-bound, maxval=bound, dtype=jnp.float32)
    wg = jax.random.uniform(keys[2], (num_layers, hidden_size, hidden_size),
                            minval=-bound, maxval=bound, dtype=jnp.float32)
    bg = jax.random.uniform(keys[3], (num_layers, hidden_size),
                            minval=-bound, maxval=bound, dtype=jnp.float32)
    return wt, bt, wg, bg


def highway_reference_f32(x, wt, bt, wg, bg):
    """Pure-JAX f32 reference matching the PyTorch forward."""
    for l in range(wt.shape[0]):
        t = jnp.maximum(x @ wt[l] + bt[l], 0.0)
        g = jax.nn.sigmoid(x @ wg[l] + bg[l])
        x = g * t + (1.0 - g) * x
    return x


def highway_reference_bf16(x, wt, bt, wg, bg):
    """Reference mirroring the kernel's bf16-matmul / f32-accumulate numerics."""
    for l in range(wt.shape[0]):
        xb = x.astype(jnp.bfloat16)
        t = jnp.maximum(
            jnp.dot(xb, wt[l].astype(jnp.bfloat16),
                    preferred_element_type=jnp.float32) + bt[l], 0.0)
        g = jax.nn.sigmoid(
            jnp.dot(xb, wg[l].astype(jnp.bfloat16),
                    preferred_element_type=jnp.float32) + bg[l])
        x = g * (t - x) + x
    return x


# --------------------------------------------------------------------------- #
# Demo / self-test
# --------------------------------------------------------------------------- #
if __name__ == "__main__":
    num_layers = 2
    hidden_size = 32
    batch, seq = 2, 8

    key = jax.random.PRNGKey(0)
    k_x, k_p = jax.random.split(key)
    x = jax.random.normal(k_x, (batch, seq, hidden_size), dtype=jnp.float32)
    wt, bt, wg, bg = init_params(k_p, num_layers, hidden_size)

    # One-time weight prep (kept off the per-call hot path).
    w_fused, b_fused = prepare_params(wt, bt, wg, bg)

    out = jax.block_until_ready(highway_encoder(x, w_fused, b_fused))
    out_stream = jax.block_until_ready(
        highway_encoder(x, w_fused, b_fused, force_streaming=True))

    ref_bf16 = highway_reference_bf16(x, wt, bt, wg, bg)
    ref_f32 = highway_reference_f32(x, wt, bt, wg, bg)

    assert out.shape == x.shape
    # Tight check vs a reference using the same bf16-matmul / f32-accum numerics
    # (extra slack covers the approx-reciprocal sigmoid).
    assert jnp.allclose(out, ref_bf16, atol=1e-2, rtol=1e-2), "resident vs bf16 ref"
    assert jnp.allclose(out_stream, ref_bf16, atol=1e-2, rtol=1e-2), "streaming vs bf16 ref"
    assert jnp.allclose(out, out_stream, atol=1e-6, rtol=1e-6), "paths disagree"
    # Loose sanity check vs the exact f32 PyTorch-equivalent semantics.
    assert jnp.allclose(out, ref_f32, atol=5e-2, rtol=5e-2), "mismatch vs f32 reference"

    print("KERNEL_OK")
</pallas_src>

<mosaic_0001>
module attributes {stable_mosaic.version = 11 : i64} {
  func.func @_resident_kernel(%arg0: i32, %arg1: memref<8x32xf32, #tpu.memory_space<vmem>>, %arg2: memref<2x32x256xbf16, #tpu.memory_space<vmem>>, %arg3: memref<2x1x256xf32, #tpu.memory_space<vmem>>, %arg4: memref<8x32xf32, #tpu.memory_space<vmem>>) attributes {dimension_semantics = [#tpu.dimension_semantics<parallel>], iteration_bounds = array<i64: 2>, scalar_prefetch = 0 : i64, scratch_operands = 0 : i64, tpu.core_type = #tpu.core_type<tc>, window_params = [{transform_indices = @transform_0, window_bounds = array<i64: 8, 32>}, {pipeline_mode = #tpu.pipeline_mode<synchronous>, transform_indices = @transform_1, window_bounds = array<i64: 2, 32, 256>}, {pipeline_mode = #tpu.pipeline_mode<synchronous>, transform_indices = @transform_2, window_bounds = array<i64: 2, 1, 256>}, {transform_indices = @transform_3, window_bounds = array<i64: 8, 32>}]} {
    %c0 = arith.constant 0 : index
    %c0_0 = arith.constant 0 : index
    %0 = vector.load %arg1[%c0, %c0_0] : memref<8x32xf32, #tpu.memory_space<vmem>>, vector<8x32xf32>
    %c0_i32 = arith.constant 0 : i32
    %1 = arith.truncf %0 : vector<8x32xf32> to vector<8x32xbf16>
    %2 = arith.index_cast %c0_i32 : i32 to index
    %c0_1 = arith.constant 0 : index
    %c0_2 = arith.constant 0 : index
    %3 = vector.load %arg2[%2, %c0_1, %c0_2] : memref<2x32x256xbf16, #tpu.memory_space<vmem>>, vector<1x32x256xbf16>
    %4 = vector.shape_cast %3 : vector<1x32x256xbf16> to vector<32x256xbf16>
    %cst = arith.constant dense<0.000000e+00> : vector<8x256xf32>
    %5 = tpu.matmul %1, %4, %cst {dimension_numbers = #tpu.dot_dimension_numbers<[1], [0], [0], [1], [0, 0, 1, 1], [], []>} : vector<8x32xbf16>, vector<32x256xbf16>, vector<8x256xf32> -> vector<8x256xf32>
    %6 = arith.index_cast %c0_i32 : i32 to index
    %c0_3 = arith.constant 0 : index
    %c0_4 = arith.constant 0 : index
    %7 = vector.load %arg3[%6, %c0_3, %c0_4] : memref<2x1x256xf32, #tpu.memory_space<vmem>>, vector<1x1x256xf32>
    %8 = vector.shape_cast %7 : vector<1x1x256xf32> to vector<1x256xf32>
    %9 = vector.broadcast %8 : vector<1x256xf32> to vector<8x256xf32>
    %10 = arith.addf %5, %9 : vector<8x256xf32>
    %11 = vector.extract_strided_slice %10 {offsets = [0, 0], sizes = [8, 32], strides = [1, 1]} : vector<8x256xf32> to vector<8x32xf32>
    %cst_5 = arith.constant 0.000000e+00 : f32
    %12 = vector.broadcast %cst_5 : f32 to vector<8x32xf32>
    %13 = arith.maximumf %11, %12 : vector<8x32xf32>
    %14 = vector.extract_strided_slice %10 {offsets = [0, 128], sizes = [8, 32], strides = [1, 1]} : vector<8x256xf32> to vector<8x32xf32>
    %cst_6 = arith.constant 0.000000e+00 : f32
    %15 = vector.broadcast %cst_6 : f32 to vector<8x32xf32>
    %16 = arith.subf %15, %14 : vector<8x32xf32>
    %17 = math.exp %16 : vector<8x32xf32>
    %cst_7 = arith.constant 1.000000e+00 : f32
    %18 = vector.broadcast %cst_7 : f32 to vector<8x32xf32>
    %19 = arith.addf %18, %17 : vector<8x32xf32>
    %20 = tpu.reciprocal %19 {approx = true} : vector<8x32xf32> -> vector<8x32xf32>
    %21 = arith.subf %13, %0 : vector<8x32xf32>
    %22 = arith.mulf %20, %21 : vector<8x32xf32>
    %23 = arith.addf %22, %0 : vector<8x32xf32>
    %c1_i32 = arith.constant 1 : i32
    %24 = arith.truncf %23 : vector<8x32xf32> to vector<8x32xbf16>
    %25 = arith.index_cast %c1_i32 : i32 to index
    %c0_8 = arith.constant 0 : index
    %c0_9 = arith.constant 0 : index
    %26 = vector.load %arg2[%25, %c0_8, %c0_9] : memref<2x32x256xbf16, #tpu.memory_space<vmem>>, vector<1x32x256xbf16>
    %27 = vector.shape_cast %26 : vector<1x32x256xbf16> to vector<32x256xbf16>
    %cst_10 = arith.constant dense<0.000000e+00> : vector<8x256xf32>
    %28 = tpu.matmul %24, %27, %cst_10 {dimension_numbers = #tpu.dot_dimension_numbers<[1], [0], [0], [1], [0, 0, 1, 1], [], []>} : vector<8x32xbf16>, vector<32x256xbf16>, vector<8x256xf32> -> vector<8x256xf32>
    %29 = arith.index_cast %c1_i32 : i32 to index
    %c0_11 = arith.constant 0 : index
    %c0_12 = arith.constant 0 : index
    %30 = vector.load %arg3[%29, %c0_11, %c0_12] : memref<2x1x256xf32, #tpu.memory_space<vmem>>, vector<1x1x256xf32>
    %31 = vector.shape_cast %30 : vector<1x1x256xf32> to vector<1x256xf32>
    %32 = vector.broadcast %31 : vector<1x256xf32> to vector<8x256xf32>
    %33 = arith.addf %28, %32 : vector<8x256xf32>
    %34 = vector.extract_strided_slice %33 {offsets = [0, 0], sizes = [8, 32], strides = [1, 1]} : vector<8x256xf32> to vector<8x32xf32>
    %cst_13 = arith.constant 0.000000e+00 : f32
    %35 = vector.broadcast %cst_13 : f32 to vector<8x32xf32>
    %36 = arith.maximumf %34, %35 : vector<8x32xf32>
    %37 = vector.extract_strided_slice %33 {offsets = [0, 128], sizes = [8, 32], strides = [1, 1]} : vector<8x256xf32> to vector<8x32xf32>
    %cst_14 = arith.constant 0.000000e+00 : f32
    %38 = vector.broadcast %cst_14 : f32 to vector<8x32xf32>
    %39 = arith.subf %38, %37 : vector<8x32xf32>
    %40 = math.exp %39 : vector<8x32xf32>
    %cst_15 = arith.constant 1.000000e+00 : f32
    %41 = vector.broadcast %cst_15 : f32 to vector<8x32xf32>
    %42 = arith.addf %41, %40 : vector<8x32xf32>
    %43 = tpu.reciprocal %42 {approx = true} : vector<8x32xf32> -> vector<8x32xf32>
    %44 = arith.subf %36, %23 : vector<8x32xf32>
    %45 = arith.mulf %43, %44 : vector<8x32xf32>
    %46 = arith.addf %45, %23 : vector<8x32xf32>
    %c2_i32 = arith.constant 2 : i32
    %c0_16 = arith.constant 0 : index
    %c0_17 = arith.constant 0 : index
    %47 = vector.load %arg4[%c0_16, %c0_17] : memref<8x32xf32, #tpu.memory_space<vmem>>, vector<8x32xf32>
    tpu.vector_store %arg4[%c0_16, %c0_17], %46 {strides = array<i32>} : memref<8x32xf32, #tpu.memory_space<vmem>>, vector<8x32xf32>,
    return
  }
  func.func @transform_0(%arg0: i32) -> (i32, i32) {
    %c0_i32 = arith.constant 0 : i32
    %c0_i32_0 = arith.constant 0 : i32
    return %arg0, %c0_i32 : i32, i32
  }
  func.func @transform_1(%arg0: i32) -> (i32, i32, i32) {
    %c0_i32 = arith.constant 0 : i32
    %c0_i32_0 = arith.constant 0 : i32
    %c0_i32_1 = arith.constant 0 : i32
    %c0_i32_2 = arith.constant 0 : i32
    return %c0_i32, %c0_i32_0, %c0_i32_1 : i32, i32, i32
  }
  func.func @transform_2(%arg0: i32) -> (i32, i32, i32) {
    %c0_i32 = arith.constant 0 : i32
    %c0_i32_0 = arith.constant 0 : i32
    %c0_i32_1 = arith.constant 0 : i32
    %c0_i32_2 = arith.constant 0 : i32
    return %c0_i32, %c0_i32_0, %c0_i32_1 : i32, i32, i32
  }
  func.func @transform_3(%arg0: i32) -> (i32, i32) {
    %c0_i32 = arith.constant 0 : i32
    %c0_i32_0 = arith.constant 0 : i32
    return %arg0, %c0_i32 : i32, i32
  }
}

module attributes {stable_mosaic.version = 11 : i64} {
  func.func @_resident_kernel(%arg0: i32, %arg1: memref<8x32xf32, #tpu.memory_space<vmem>>, %arg2: memref<2x32x256xbf16, #tpu.memory_space<vmem>>, %arg3: memref<2x1x256xf32, #tpu.memory_space<vmem>>, %arg4: memref<8x32xf32, #tpu.memory_space<vmem>>) attributes {dimension_semantics = [#tpu.dimension_semantics<parallel>], iteration_bounds = array<i64: 2>, scalar_prefetch = 0 : i64, scratch_operands = 0 : i64, tpu.core_type = #tpu.core_type<tc>, window_params = [{transform_indices = @transform_0, window_bounds = array<i64: 8, 32>}, {pipeline_mode = #tpu.pipeline_mode<synchronous>, transform_indices = @transform_1, window_bounds = array<i64: 2, 32, 256>}, {pipeline_mode = #tpu.pipeline_mode<synchronous>, transform_indices = @transform_2, window_bounds = array<i64: 2, 1, 256>}, {transform_indices = @transform_3, window_bounds = array<i64: 8, 32>}]} {
    %c0 = arith.constant 0 : index
    %c0_0 = arith.constant 0 : index
    %0 = vector.load %arg1[%c0, %c0_0] : memref<8x32xf32, #tpu.memory_space<vmem>>, vector<8x32xf32>
    %c0_i32 = arith.constant 0 : i32
    %1 = arith.truncf %0 : vector<8x32xf32> to vector<8x32xbf16>
    %2 = arith.index_cast %c0_i32 : i32 to index
    %c0_1 = arith.constant 0 : index
    %c0_2 = arith.constant 0 : index
    %3 = vector.load %arg2[%2, %c0_1, %c0_2] : memref<2x32x256xbf16, #tpu.memory_space<vmem>>, vector<1x32x256xbf16>
    %4 = vector.shape_cast %3 : vector<1x32x256xbf16> to vector<32x256xbf16>
    %cst = arith.constant dense<0.000000e+00> : vector<8x256xf32>
    %5 = tpu.matmul %1, %4, %cst {dimension_numbers = #tpu.dot_dimension_numbers<[1], [0], [0], [1], [0, 0, 1, 1], [], []>} : vector<8x32xbf16>, vector<32x256xbf16>, vector<8x256xf32> -> vector<8x256xf32>
    %6 = arith.index_cast %c0_i32 : i32 to index
    %c0_3 = arith.constant 0 : index
    %c0_4 = arith.constant 0 : index
    %7 = vector.load %arg3[%6, %c0_3, %c0_4] : memref<2x1x256xf32, #tpu.memory_space<vmem>>, vector<1x1x256xf32>
    %8 = vector.shape_cast %7 : vector<1x1x256xf32> to vector<1x256xf32>
    %9 = vector.broadcast %8 : vector<1x256xf32> to vector<8x256xf32>
    %10 = arith.addf %5, %9 : vector<8x256xf32>
    %11 = vector.extract_strided_slice %10 {offsets = [0, 0], sizes = [8, 32], strides = [1, 1]} : vector<8x256xf32> to vector<8x32xf32>
    %cst_5 = arith.constant 0.000000e+00 : f32
    %12 = vector.broadcast %cst_5 : f32 to vector<8x32xf32>
    %13 = arith.maximumf %11, %12 : vector<8x32xf32>
    %14 = vector.extract_strided_slice %10 {offsets = [0, 128], sizes = [8, 32], strides = [1, 1]} : vector<8x256xf32> to vector<8x32xf32>
    %cst_6 = arith.constant 0.000000e+00 : f32
    %15 = vector.broadcast %cst_6 : f32 to vector<8x32xf32>
    %16 = arith.subf %15, %14 : vector<8x32xf32>
    %17 = math.exp %16 : vector<8x32xf32>
    %cst_7 = arith.constant 1.000000e+00 : f32
    %18 = vector.broadcast %cst_7 : f32 to vector<8x32xf32>
    %19 = arith.addf %18, %17 : vector<8x32xf32>
    %20 = tpu.reciprocal %19 {approx = true} : vector<8x32xf32> -> vector<8x32xf32>
    %21 = arith.subf %13, %0 : vector<8x32xf32>
    %22 = arith.mulf %20, %21 : vector<8x32xf32>
    %23 = arith.addf %22, %0 : vector<8x32xf32>
    %c1_i32 = arith.constant 1 : i32
    %24 = arith.truncf %23 : vector<8x32xf32> to vector<8x32xbf16>
    %25 = arith.index_cast %c1_i32 : i32 to index
    %c0_8 = arith.constant 0 : index
    %c0_9 = arith.constant 0 : index
    %26 = vector.load %arg2[%25, %c0_8, %c0_9] : memref<2x32x256xbf16, #tpu.memory_space<vmem>>, vector<1x32x256xbf16>
    %27 = vector.shape_cast %26 : vector<1x32x256xbf16> to vector<32x256xbf16>
    %cst_10 = arith.constant dense<0.000000e+00> : vector<8x256xf32>
    %28 = tpu.matmul %24, %27, %cst_10 {dimension_numbers = #tpu.dot_dimension_numbers<[1], [0], [0], [1], [0, 0, 1, 1], [], []>} : vector<8x32xbf16>, vector<32x256xbf16>, vector<8x256xf32> -> vector<8x256xf32>
    %29 = arith.index_cast %c1_i32 : i32 to index
    %c0_11 = arith.constant 0 : index
    %c0_12 = arith.constant 0 : index
    %30 = vector.load %arg3[%29, %c0_11, %c0_12] : memref<2x1x256xf32, #tpu.memory_space<vmem>>, vector<1x1x256xf32>
    %31 = vector.shape_cast %30 : vector<1x1x256xf32> to vector<1x256xf32>
    %32 = vector.broadcast %31 : vector<1x256xf32> to vector<8x256xf32>
    %33 = arith.addf %28, %32 : vector<8x256xf32>
    %34 = vector.extract_strided_slice %33 {offsets = [0, 0], sizes = [8, 32], strides = [1, 1]} : vector<8x256xf32> to vector<8x32xf32>
    %cst_13 = arith.constant 0.000000e+00 : f32
    %35 = vector.broadcast %cst_13 : f32 to vector<8x32xf32>
    %36 = arith.maximumf %34, %35 : vector<8x32xf32>
    %37 = vector.extract_strided_slice %33 {offsets = [0, 128], sizes = [8, 32], strides = [1, 1]} : vector<8x256xf32> to vector<8x32xf32>
    %cst_14 = arith.constant 0.000000e+00 : f32
    %38 = vector.broadcast %cst_14 : f32 to vector<8x32xf32>
    %39 = arith.subf %38, %37 : vector<8x32xf32>
    %40 = math.exp %39 : vector<8x32xf32>
    %cst_15 = arith.constant 1.000000e+00 : f32
    %41 = vector.broadcast %cst_15 : f32 to vector<8x32xf32>
    %42 = arith.addf %41, %40 : vector<8x32xf32>
    %43 = tpu.reciprocal %42 {approx = true} : vector<8x32xf32> -> vector<8x32xf32>
    %44 = arith.subf %36, %23 : vector<8x32xf32>
    %45 = arith.mulf %43, %44 : vector<8x32xf32>
    %46 = arith.addf %45, %23 : vector<8x32xf32>
    %c2_i32 = arith.constant 2 : i32
    %c0_16 = arith.constant 0 : index
    %c0_17 = arith.constant 0 : index
    %47 = vector.load %arg4[%c0_16, %c0_17] : memref<8x32xf32, #tpu.memory_space<vmem>>, vector<8x32xf32>
    tpu.vector_store %arg4[%c0_16, %c0_17], %46 {strides = array<i32>} : memref<8x32xf32, #tpu.memory_space<vmem>>, vector<8x32xf32>,
    return
  }
  func.func @transform_0(%arg0: i32) -> (i32, i32) {
    %c0_i32 = arith.constant 0 : i32
    %c0_i32_0 = arith.constant 0 : i32
    return %arg0, %c0_i32 : i32, i32
  }
  func.func @transform_1(%arg0: i32) -> (i32, i32, i32) {
    %c0_i32 = arith.constant 0 : i32
    %c0_i32_0 = arith.constant 0 : i32
    %c0_i32_1 = arith.constant 0 : i32
    %c0_i32_2 = arith.constant 0 : i32
    return %c0_i32, %c0_i32_0, %c0_i32_1 : i32, i32, i32
  }
  func.func @transform_2(%arg0: i32) -> (i32, i32, i32) {
    %c0_i32 = arith.constant 0 : i32
    %c0_i32_0 = arith.constant 0 : i32
    %c0_i32_1 = arith.constant 0 : i32
    %c0_i32_2 = arith.constant 0 : i32
    return %c0_i32, %c0_i32_0, %c0_i32_1 : i32, i32, i32
  }
  func.func @transform_3(%arg0: i32) -> (i32, i32) {
    %c0_i32 = arith.constant 0 : i32
    %c0_i32_0 = arith.constant 0 : i32
    return %arg0, %c0_i32 : i32, i32
  }
}

</mosaic_0001>

<llo_original>
// kernel: tpu_custom_call.1
$region0: #{tpu_custom_call.1}
  #allocation0 [shape = 'u32[]', space=smem, size = 0x4, offset = 0x4, fixed_abs, tag = 'smem constant byte address 0x4 - core index']
  #allocation1 [shape = 'u32[144,128]{1,0:T(1,128)}', space=vmem, size = 0x12000, scoped, tag = 'internal scratch']
  %s0 = inlined_call_operand.hbm [shape: f32[16,32], index: 0, kind: input, shape index: {}]
  %s1 = inlined_call_operand.hbm [shape: bf16[2,32,256], index: 1, kind: input, shape index: {}]
  %s2 = inlined_call_operand.vmem [shape: f32[2,1,256], index: 2, kind: input, shape index: {}]
  %s3 = inlined_call_operand.hbm [shape: f32[16,32], index: 3, kind: output, shape index: {}]
  %s4 = sld [smem:[#allocation0]]
  $region53: #{tpu_custom_call.1} parent=0
    _
  %s6 = ssub.s32 1, %s4
  %s7 = scalar_select 0, %s6, %s4
  $region1: #{tpu_custom_call.1} parent=0
    #allocation2 [shape = 'u8[8192]{0}', space=vmem, size = 0x2000, scoped, tag = 'input window, operand 0']
    #allocation3 [shape = 's32[2]{0}', space=sflag, size = 0x8, scoped, tag = 'scoped memory for tpu_custom_call.1']
    #allocation4 [shape = 's32[2]{0}', space=sflag, size = 0x8, scoped, tag = 'scoped memory for tpu_custom_call.1']
    #allocation5 [shape = 'u8[32768]{0}', space=vmem, size = 0x8000, scoped, tag = 'input window, operand 1, single buffered']
    #allocation6 [shape = 's32[1]{0}', space=sflag, size = 0x4, scoped, tag = 'scoped memory for tpu_custom_call.1']
    #allocation7 [shape = 'u8[8192]{0}', space=vmem, size = 0x2000, scoped, tag = 'output window, operand 0']
    %8 = vsyncpa [#allocation3], 0
    %s9 = scalar_lea.sflag [#allocation3], 1
    %10 = vsyncpa %s9, 0
    %11 = vsyncpa [#allocation6], 0
    %12 = vsyncpa [#allocation4], 0
    %s13 = scalar_lea.sflag [#allocation4], 1
    %14 = vsyncpa %s13, 0
    loop: start=0, step=1, limit=4
    $region2: #{tpu_custom_call.1} parent=1 // loop_pre_header
      _
    $region3: #{tpu_custom_call.1} parent=1 // loop_header
      %s16 = sphi 0, %s20
      %p17 = scmp.ge.s32.totalorder %s16, 4
      %s26 = sphi 0, %s28
      %s29 = sphi 0, %s26
      %s30 = sphi 0, %s29
      %s46 = sphi 0, %s30
      %s50 = sphi 0, %s50
      %s52 = sphi 0, %s50
      %s53 = sphi 0, %s52
      %s67 = sphi 0, %s53
      %s71 = sphi 0, %s71
      %s73 = sphi 0, %s71
      %s74 = sphi 0, %s73
      %s88 = sphi 0, %s74
      %s94 = sphi 0, %s96
      %s97 = sphi 0, %s94
      %s98 = sphi 0, %s97
      %s114 = sphi 0, %s98
    $region4: #{tpu_custom_call.1} parent=1 // loop_header_branch
      %19 = sbr.rel (%p17) target = $region8
    $region5: #{tpu_custom_call.1} parent=1 // loop_body
      %s21 = ssub.s32 %s16, 1
      %s22 = ssub.s32 %s16, 2
      %s23 = sadd.s32 %s16, 1
      %s24 = ssub.s32 %s16, %s23
      %p25 = scmp.eq.s32.totalorder %s24, 0
      %s27 = sadd.s32 %s26, 1
      %s28 = scalar_select %p25, %s26, %s27
      %p31 = pneg %p25
      %p32 = scmp.eq.s32.totalorder %s16, 1
      %p33 = por %p31, %p32
      %p34 = scmp.ne.s32.totalorder %s26, %s29
      %p35 = scmp.eq.s32.totalorder %s16, 0
      %p36 = por %p34, %p35
      %p37 = scmp.ne.s32.totalorder %s26, %s29
      %p38 = scmp.eq.s32.totalorder %s21, 1
      %p39 = por %p37, %p38
      %p40 = scmp.ne.s32.totalorder %s29, %s30
      %p41 = scmp.eq.s32.totalorder %s21, 0
      %p42 = por %p40, %p41
      %p43 = scmp.ne.s32.totalorder %s29, %s30
      %p44 = scmp.eq.s32.totalorder %s22, 1
      %p45 = por %p43, %p44
      %p47 = scmp.ne.s32.totalorder %s30, %s46
      %p48 = scmp.eq.s32.totalorder %s22, 0
      %p49 = por %p47, %p48
      %s51 = sadd.s32 %s50, 1
      %p54 = scmp.eq.s32.totalorder %s16, 1
      %p55 = scmp.ne.s32.totalorder %s50, %s52
      %p56 = scmp.eq.s32.totalorder %s16, 0
      %p57 = por %p55, %p56
      %p58 = scmp.ne.s32.totalorder %s50, %s52
      %p59 = scmp.eq.s32.totalorder %s21, 1
      %p60 = por %p58, %p59
      %p61 = scmp.ne.s32.totalorder %s52, %s53
      %p62 = scmp.eq.s32.totalorder %s21, 0
      %p63 = por %p61, %p62
      %p64 = scmp.ne.s32.totalorder %s52, %s53
      %p65 = scmp.eq.s32.totalorder %s22, 1
      %p66 = por %p64, %p65
      %p68 = scmp.ne.s32.totalorder %s53, %s67
      %p69 = scmp.eq.s32.totalorder %s22, 0
      %p70 = por %p68, %p69
      %s72 = sadd.s32 %s71, 1
      %p75 = scmp.eq.s32.totalorder %s16, 1
      %p76 = scmp.ne.s32.totalorder %s71, %s73
      %p77 = scmp.eq.s32.totalorder %s16, 0
      %p78 = por %p76, %p77
      %p79 = scmp.ne.s32.totalorder %s71, %s73
      %p80 = scmp.eq.s32.totalorder %s21, 1
      %p81 = por %p79, %p80
      %p82 = scmp.ne.s32.totalorder %s73, %s74
      %p83 = scmp.eq.s32.totalorder %s21, 0
      %p84 = por %p82, %p83
      %p85 = scmp.ne.s32.totalorder %s73, %s74
      %p86 = scmp.eq.s32.totalorder %s22, 1
      %p87 = por %p85, %p86
      %p89 = scmp.ne.s32.totalorder %s74, %s88
      %p90 = scmp.eq.s32.totalorder %s22, 0
      %p91 = por %p89, %p90
      %s92 = ssub.s32 %s16, %s23
      %p93 = scmp.eq.s32.totalorder %s92, 0
      %s95 = sadd.s32 %s94, 1
      %s96 = scalar_select %p93, %s94, %s95
      %p99 = pneg %p93
      %p100 = scmp.eq.s32.totalorder %s16, 1
      %p101 = por %p99, %p100
      %p102 = scmp.ne.s32.totalorder %s94, %s97
      %p103 = scmp.eq.s32.totalorder %s16, 0
      %p104 = por %p102, %p103
      %p105 = scmp.ne.s32.totalorder %s94, %s97
      %p106 = scmp.eq.s32.totalorder %s21, 1
      %p107 = por %p105, %p106
      %p108 = scmp.ne.s32.totalorder %s97, %s98
      %p109 = scmp.eq.s32.totalorder %s21, 0
      %p110 = por %p108, %p109
      %p111 = scmp.ne.s32.totalorder %s97, %s98
      %p112 = scmp.eq.s32.totalorder %s22, 1
      %p113 = por %p111, %p112
      %p115 = scmp.ne.s32.totalorder %s98, %s114
      %p116 = scmp.eq.s32.totalorder %s22, 0
      %p117 = por %p115, %p116
      %p118 = scmp.le.s32.totalorder 1, %s16
      %p119 = scmp.lt.s32.totalorder %s16, 3
      %p120 = pnand %p118, %p119
      %p121 = pneg %p120
      // Predicated region
      $region9: #{tpu_custom_call.1} parent=5 // pred_check
        _
      $region10: #{tpu_custom_call.1} parent=5 // pred_check_branch
        %123 = sbr.rel (%p120) target = $region12
      $region11: #{tpu_custom_call.1} parent=5 // pred_region
        %s124 = ssub.s32 %s16, 1
        // Predicated region
        $region13: #{tpu_custom_call.1} parent=11 // pred_check
          %p125 = pneg %p63
        $region14: #{tpu_custom_call.1} parent=11 // pred_check_branch
          %127 = sbr.rel (%p125) target = $region16
        $region15: #{tpu_custom_call.1} parent=11 // pred_region
          %s129 = ssub.s32 1024, 1024
          %130 = vsyncadd [#allocation6], %s129
          %s131 = sshll.u32 [#allocation5], 4
          %s132 = int_to_ptr.vmem [resolvable:$true] %s131
          %137 = dma.hbm_to_vmem [thread:$0]  %s1, 1024, %s132, [#allocation6], 128, 128, 8
        $region16: #{tpu_custom_call.1} parent=11 // pred_fallthru
          _
        // Predicated region
        $region17: #{tpu_custom_call.1} parent=11 // pred_check
          %p138 = pneg %p84
        $region18: #{tpu_custom_call.1} parent=11 // pred_check_branch
          %140 = sbr.rel (%p138) target = $region20
        $region19: #{tpu_custom_call.1} parent=11 // pred_region
          _
        $region20: #{tpu_custom_call.1} parent=11 // pred_fallthru
          _
      $region12: #{tpu_custom_call.1} parent=5 // pred_fallthru
        _
      %p141 = scmp.lt.s32.totalorder %s16, 2
      // Predicated region
      $region21: #{tpu_custom_call.1} parent=5 // pred_check
        %p142 = pneg %p141
      $region22: #{tpu_custom_call.1} parent=5 // pred_check_branch
        %144 = sbr.rel (%p142) target = $region24
      $region23: #{tpu_custom_call.1} parent=5 // pred_region
        // Predicated region
        $region25: #{tpu_custom_call.1} parent=23 // pred_check
          %p145 = pneg %p36
        $region26: #{tpu_custom_call.1} parent=23 // pred_check_branch
          %147 = sbr.rel (%p145) target = $region28
        $region27: #{tpu_custom_call.1} parent=23 // pred_region
          %s148 = sand.u32 %s26, 1
          %s149 = scalar_lea.sflag [#allocation3], %s148
          %s150 = sand.u32 %s26, 1
          %s151 = smul.addr %s150, 8
          %s152 = scalar_lea.vmem [#allocation2], %s151
          %s154 = ssub.s32 128, 128
          %155 = vsyncadd %s149, %s154
          %s156 = smul.addr %s16, 128
          %s157 = scalar_lea.hbm %s0, %s156
          %s159 = sshll.u32 %s152, 4
          %s160 = int_to_ptr.vmem [resolvable:$true] %s159
          %162 = dma.hbm_to_vmem [thread:$0]  %s157, 128, %s160, %s149
        $region28: #{tpu_custom_call.1} parent=23 // pred_fallthru
          _
      $region24: #{tpu_custom_call.1} parent=5 // pred_fallthru
        _
      %p163 = scmp.le.s32.totalorder 1, %s16
      %p164 = scmp.lt.s32.totalorder %s16, 3
      %p165 = pnand %p163, %p164
      %p166 = pneg %p165
      // Predicated region
      $region29: #{tpu_custom_call.1} parent=5 // pred_check
        _
      $region30: #{tpu_custom_call.1} parent=5 // pred_check_branch
        %168 = sbr.rel (%p165) target = $region32
      $region31: #{tpu_custom_call.1} parent=5 // pred_region
        %s169 = ssub.s32 %s16, 1
        %s170 = sand.u32 %s29, 1
        %s171 = scalar_lea.sflag [#allocation3], %s170
        %s172 = sand.u32 %s29, 1
        %s173 = smul.addr %s172, 8
        %s174 = scalar_lea.vmem [#allocation2], %s173
        // Predicated region
        $region33: #{tpu_custom_call.1} parent=31 // pred_check
          %p175 = pneg %p42
        $region34: #{tpu_custom_call.1} parent=31 // pred_check_branch
          %177 = sbr.rel (%p175) target = $region36
        $region35: #{tpu_custom_call.1} parent=31 // pred_region
          %178 = dma.done %s171, 128
        $region36: #{tpu_custom_call.1} parent=31 // pred_fallthru
          _
        // Predicated region
        $region37: #{tpu_custom_call.1} parent=31 // pred_check
          %p179 = pneg %p63
        $region38: #{tpu_custom_call.1} parent=31 // pred_check_branch
          %181 = sbr.rel (%p179) target = $region40
        $region39: #{tpu_custom_call.1} parent=31 // pred_region
          %182 = dma.done [#allocation6], 1024
        $region40: #{tpu_custom_call.1} parent=31 // pred_fallthru
          _
        %s183 = sand.u32 %s29, 1
        %s184 = scalar_lea.sflag [#allocation3], %s183
        %s185 = sand.u32 %s29, 1
        %s186 = smul.addr %s185, 8
        %s187 = scalar_lea.vmem [#allocation2], %s186
        %p188 = pneg %p42
        %p189 = pneg %p39
        %p190 = pneg %p63
        %p191 = pneg %p60
        %p192 = pneg %p84
        %p193 = pneg %p81
        %p194 = pneg %p110
        %p195 = pneg %p107
        %s196 = sand.u32 %s97, 1
        %s197 = scalar_lea.sflag [#allocation4], %s196
        %s198 = sand.u32 %s97, 1
        %s199 = smul.addr %s198, 8
        %s200 = scalar_lea.vmem [#allocation7], %s199
        %v202 = vld [vmem:[%s174] sm:$0xff]
        %v203 = vpack.c.bf16 %v202, %v202
        %v204 = vld [vmem:[#allocation5] sm:$0xff]
        %v205 = vld [vmem:[#allocation5 + $0x8] sm:$0xff]
        %v206 = vld [vmem:[#allocation5 + $0x10] sm:$0xff]
        %v207 = vld [vmem:[#allocation5 + $0x18] sm:$0xff]
        %v208 = vld [vmem:[%s2] sm:$0x3]
        %v210 = vlaneseq
        %v211 = vshrl.u32 %v210, 7
        %v212 = vsub.s32 0, %v211
        %v213 = vrot.slane %v208, %v212
        %v214 = vlaneseq
        %v215 = vshrl.u32 %v214, 7
        %v216 = vsub.s32 1, %v215
        %v217 = vrot.slane %v208, %v216
        %v224 = vunpack.c.l.b16 %v204
        %v225 = vunpack.c.h.b16 %v204
        %v226 = vunpack.c.l.b16 %v205
        %v227 = vunpack.c.h.b16 %v205
        %v228 = vunpack.c.l.b16 %v206
        %v229 = vunpack.c.h.b16 %v206
        %v230 = vunpack.c.l.b16 %v207
        %v231 = vunpack.c.h.b16 %v207
        %v232 = vpack.c.b16 %v226, %v224
        %v233 = vpack.c.b16 %v227, %v225
        %v234 = vpack.c.b16 %v230, %v228
        %v235 = vpack.c.b16 %v231, %v229
        %vm240 = vcmask 261120
        %v242 = vsel %vm240, %v203, 0
        %244 = vmatprep.subr.bf16.mxu0 %v233
        %245 = vmatpush1.bf16.msra.mxu0 %v232
        %246 = vmatprep.subr.bf16.mxu0 %v235
        %247 = vmatpush1.bf16.msra.mxu0 %v234
        %248 = vmatprep.subr.bf16.mxu0 0
        %249 = vmatpush1.bf16.msra.mxu0 0
        %250 = vmatprep.subr.bf16.mxu0 0
        %251 = vmatpush1.bf16.msra.mxu0 0
        %252 = vmatprep.subr.bf16.mxu0 0
        %253 = vmatpush1.bf16.msra.mxu0 0
        %254 = vmatprep.subr.bf16.mxu0 0
        %255 = vmatpush1.bf16.msra.mxu0 0
        %256 = vmatprep.subr.bf16.mxu0 0
        %257 = vmatpush1.bf16.msra.mxu0 0
        %258 = vmatprep.subr.bf16.mxu0 0
        %259 = vmatpush1.bf16.msra.mxu0 0
        %260 = vmatprep.subr.bf16.mxu0 0
        %261 = vmatpush1.bf16.msra.mxu0 0
        %262 = vmatprep.subr.bf16.mxu0 0
        %263 = vmatpush1.bf16.msra.mxu0 0
        %264 = vmatprep.subr.bf16.mxu0 0
        %265 = vmatpush1.bf16.msra.mxu0 0
        %266 = vmatprep.subr.bf16.mxu0 0
        %267 = vmatpush1.bf16.msra.mxu0 0
        %268 = vmatprep.subr.bf16.mxu0 0
        %269 = vmatpush1.bf16.msra.mxu0 0
        %270 = vmatprep.subr.bf16.mxu0 0
        %271 = vmatpush1.bf16.msra.mxu0 0
        %272 = vmatprep.subr.bf16.mxu0 0
        %273 = vmatpush1.bf16.msra.mxu0 0
        %274 = vmatprep.subr.bf16.mxu0 0
        %275 = vmatpush1.bf16.msra.mxu0 0
        %276 = vmatprep.mubr.bf16.mxu0 0
        %277 = vmatmul.mubr.bf16.gmra.mrb[0].mxu0 %v242
        %v278 = vpop.f32.mrb[0].mxu0
        %v279 = vadd.f32 %v213, %v278
        %v280 = vpop.f32.mrb[0].mxu0
        %v281 = vadd.f32 %v217, %v280
        %v282 = vpop.f32.mrb[0].mxu0
        %v283 = vpop.f32.mrb[0].mxu0
        %284 = vdwg.mxu0
        %v285 = vmax.f32 %v279, 0.0
        %v286 = vsub.f32 0.0, %v281
        %v287 = vmul.f32 %v286, 1.442695
        %v288 = vpow.pop %v287
        %v289 = vadd.f32 %v288, 1.0
        %v290 = vrcp.pop %v289
        %v291 = vsub.f32 %v285, %v202
        %v292 = vmul.f32 %v290, %v291
        %v293 = vadd.f32 %v292, %v202
        %v294 = vpack.c.bf16 %v293, %v293
        %s295 = scalar_lea.vmem [#allocation5], 32
        %v296 = vld [vmem:[%s295] sm:$0xff]
        %v297 = vld [vmem:[%s295 + $0x8] sm:$0xff]
        %v298 = vld [vmem:[%s295 + $0x10] sm:$0xff]
        %v299 = vld [vmem:[%s295 + $0x18] sm:$0xff]
        %s300 = scalar_lea.vmem %s2, 2
        %v301 = vld [vmem:[%s300] sm:$0x3]
        %v303 = vlaneseq
        %v304 = vshrl.u32 %v303, 7
        %v305 = vsub.s32 0, %v304
        %v306 = vrot.slane %v301, %v305
        %v307 = vlaneseq
        %v308 = vshrl.u32 %v307, 7
        %v309 = vsub.s32 1, %v308
        %v310 = vrot.slane %v301, %v309
        %v317 = vunpack.c.l.b16 %v296
        %v318 = vunpack.c.h.b16 %v296
        %v319 = vunpack.c.l.b16 %v297
        %v320 = vunpack.c.h.b16 %v297
        %v321 = vunpack.c.l.b16 %v298
        %v322 = vunpack.c.h.b16 %v298
        %v323 = vunpack.c.l.b16 %v299
        %v324 = vunpack.c.h.b16 %v299
        %v325 = vpack.c.b16 %v319, %v317
        %v326 = vpack.c.b16 %v320, %v318
        %v327 = vpack.c.b16 %v323, %v321
        %v328 = vpack.c.b16 %v324, %v322
        %v334 = vsel %vm240, %v294, 0
        %336 = vmatprep.subr.bf16.mxu0 %v326
        %337 = vmatpush1.bf16.msra.mxu0 %v325
        %338 = vmatprep.subr.bf16.mxu0 %v328
        %339 = vmatpush1.bf16.msra.mxu0 %v327
        %340 = vmatprep.subr.bf16.mxu0 0
        %341 = vmatpush1.bf16.msra.mxu0 0
        %342 = vmatprep.subr.bf16.mxu0 0
        %343 = vmatpush1.bf16.msra.mxu0 0
        %344 = vmatprep.subr.bf16.mxu0 0
        %345 = vmatpush1.bf16.msra.mxu0 0
        %346 = vmatprep.subr.bf16.mxu0 0
        %347 = vmatpush1.bf16.msra.mxu0 0
        %348 = vmatprep.subr.bf16.mxu0 0
        %349 = vmatpush1.bf16.msra.mxu0 0
        %350 = vmatprep.subr.bf16.mxu0 0
        %351 = vmatpush1.bf16.msra.mxu0 0
        %352 = vmatprep.subr.bf16.mxu0 0
        %353 = vmatpush1.bf16.msra.mxu0 0
        %354 = vmatprep.subr.bf16.mxu0 0
        %355 = vmatpush1.bf16.msra.mxu0 0
        %356 = vmatprep.subr.bf16.mxu0 0
        %357 = vmatpush1.bf16.msra.mxu0 0
        %358 = vmatprep.subr.bf16.mxu0 0
        %359 = vmatpush1.bf16.msra.mxu0 0
        %360 = vmatprep.subr.bf16.mxu0 0
        %361 = vmatpush1.bf16.msra.mxu0 0
        %362 = vmatprep.subr.bf16.mxu0 0
        %363 = vmatpush1.bf16.msra.mxu0 0
        %364 = vmatprep.subr.bf16.mxu0 0
        %365 = vmatpush1.bf16.msra.mxu0 0
        %366 = vmatprep.subr.bf16.mxu0 0
        %367 = vmatpush1.bf16.msra.mxu0 0
        %368 = vmatprep.mubr.bf16.mxu0 0
        %369 = vmatmul.mubr.bf16.gmra.mrb[0].mxu0 %v334
        %v370 = vpop.f32.mrb[0].mxu0
        %v371 = vadd.f32 %v306, %v370
        %v372 = vpop.f32.mrb[0].mxu0
        %v373 = vadd.f32 %v310, %v372
        %v374 = vpop.f32.mrb[0].mxu0
        %v375 = vpop.f32.mrb[0].mxu0
        %376 = vdwg.mxu0
        %v377 = vmax.f32 %v371, 0.0
        %v378 = vsub.f32 0.0, %v373
        %v379 = vmul.f32 %v378, 1.442695
        %v380 = vpow.pop %v379
        %v381 = vadd.f32 %v380, 1.0
        %v382 = vrcp.pop %v381
        %v383 = vsub.f32 %v377, %v293
        %v384 = vmul.f32 %v382, %v383
        %v385 = vadd.f32 %v384, %v293
        %386 = vst.msk [vmem:[%s200] sm:$0xff] %vm240, %v385
        %s387 = sand.u32 %s97, 1
        %s388 = scalar_lea.sflag [#allocation4], %s387
        %s389 = sand.u32 %s97, 1
        %s390 = smul.addr %s389, 8
        %s391 = scalar_lea.vmem [#allocation7], %s390
        // Predicated region
        $region41: #{tpu_custom_call.1} parent=31 // pred_check
          %p392 = pneg %p107
        $region42: #{tpu_custom_call.1} parent=31 // pred_check_branch
          %394 = sbr.rel (%p392) target = $region44
        $region43: #{tpu_custom_call.1} parent=31 // pred_region
          %s396 = ssub.s32 128, 128
          %397 = vsyncadd %s388, %s396
          %s398 = smul.addr %s21, 128
          %s399 = scalar_lea.hbm %s3, %s398
          %s401 = sshll.u32 %s391, 4
          %s402 = int_to_ptr.vmem [resolvable:$true] %s401
          %404 = dma.vmem_to_hbm [thread:$0]  %s402, 128, %s399, %s388
        $region44: #{tpu_custom_call.1} parent=31 // pred_fallthru
          _
      $region32: #{tpu_custom_call.1} parent=5 // pred_fallthru
        _
      %p405 = scmp.le.s32.totalorder 2, %s16
      // Predicated region
      $region45: #{tpu_custom_call.1} parent=5 // pred_check
        %p406 = pneg %p405
      $region46: #{tpu_custom_call.1} parent=5 // pred_check_branch
        %408 = sbr.rel (%p406) target = $region48
      $region47: #{tpu_custom_call.1} parent=5 // pred_region
        %s409 = ssub.s32 %s16, 2
        // Predicated region
        $region49: #{tpu_custom_call.1} parent=47 // pred_check
          %p410 = pneg %p113
        $region50: #{tpu_custom_call.1} parent=47 // pred_check_branch
          %412 = sbr.rel (%p410) target = $region52
        $region51: #{tpu_custom_call.1} parent=47 // pred_region
          %s413 = sand.u32 %s98, 1
          %s414 = scalar_lea.sflag [#allocation4], %s413
          %s415 = sand.u32 %s98, 1
          %s416 = smul.addr %s415, 8
          %s417 = scalar_lea.vmem [#allocation7], %s416
          %418 = dma.done %s414, 128
        $region52: #{tpu_custom_call.1} parent=47 // pred_fallthru
          _
      $region48: #{tpu_custom_call.1} parent=5 // pred_fallthru
        _
    $region6: #{tpu_custom_call.1} parent=1 // loop_footer
      %s20 = sadd.s32 1, %s16
    $region7: #{tpu_custom_call.1} parent=1 // loop_footer_branch
      %15 = sbr.rel target = $region3
    $region8: #{tpu_custom_call.1} parent=1 // loop_exit
      _
    %419 = vsyncpa [#allocation3], 1
    %s420 = scalar_lea.sflag [#allocation3], 1
    %421 = vsyncpa %s420, 1
    %422 = vsyncpa [#allocation6], 1
    %423 = vsyncpa [#allocation4], 1
    %s424 = scalar_lea.sflag [#allocation4], 1
    %425 = vsyncpa %s424, 1

// kernel: tpu_custom_call.1
$region0: #{tpu_custom_call.1}
  #allocation0 [shape = 'u32[]', space=smem, size = 0x4, offset = 0x4, fixed_abs, tag = 'smem constant byte address 0x4 - core index']
  #allocation1 [shape = 'u32[144,128]{1,0:T(1,128)}', space=vmem, size = 0x12000, scoped, tag = 'internal scratch']
  %s0 = inlined_call_operand.hbm [shape: f32[16,32], index: 0, kind: input, shape index: {}]
  %s1 = inlined_call_operand.hbm [shape: bf16[2,32,256], index: 1, kind: input, shape index: {}]
  %s2 = inlined_call_operand.vmem [shape: f32[2,1,256], index: 2, kind: input, shape index: {}]
  %s3 = inlined_call_operand.hbm [shape: f32[16,32], index: 3, kind: output, shape index: {}]
  %s4 = sld [smem:[#allocation0]]
  $region53: #{tpu_custom_call.1} parent=0
    _
  %s6 = ssub.s32 1, %s4
  %s7 = scalar_select 0, %s6, %s4
  $region1: #{tpu_custom_call.1} parent=0
    #allocation2 [shape = 'u8[8192]{0}', space=vmem, size = 0x2000, scoped, tag = 'input window, operand 0']
    #allocation3 [shape = 's32[2]{0}', space=sflag, size = 0x8, scoped, tag = 'scoped memory for tpu_custom_call.1']
    #allocation4 [shape = 's32[2]{0}', space=sflag, size = 0x8, scoped, tag = 'scoped memory for tpu_custom_call.1']
    #allocation5 [shape = 'u8[32768]{0}', space=vmem, size = 0x8000, scoped, tag = 'input window, operand 1, single buffered']
    #allocation6 [shape = 's32[1]{0}', space=sflag, size = 0x4, scoped, tag = 'scoped memory for tpu_custom_call.1']
    #allocation7 [shape = 'u8[8192]{0}', space=vmem, size = 0x2000, scoped, tag = 'output window, operand 0']
    %8 = vsyncpa [#allocation3], 0
    %s9 = scalar_lea.sflag [#allocation3], 1
    %10 = vsyncpa %s9, 0
    %11 = vsyncpa [#allocation6], 0
    %12 = vsyncpa [#allocation4], 0
    %s13 = scalar_lea.sflag [#allocation4], 1
    %14 = vsyncpa %s13, 0
    loop: start=0, step=1, limit=4
    $region2: #{tpu_custom_call.1} parent=1 // loop_pre_header
      _
    $region3: #{tpu_custom_call.1} parent=1 // loop_header
      %s16 = sphi 0, %s20
      %p17 = scmp.ge.s32.totalorder %s16, 4
      %s26 = sphi 0, %s28
      %s29 = sphi 0, %s26
      %s30 = sphi 0, %s29
      %s46 = sphi 0, %s30
      %s50 = sphi 0, %s50
      %s52 = sphi 0, %s50
      %s53 = sphi 0, %s52
      %s67 = sphi 0, %s53
      %s71 = sphi 0, %s71
      %s73 = sphi 0, %s71
      %s74 = sphi 0, %s73
      %s88 = sphi 0, %s74
      %s94 = sphi 0, %s96
      %s97 = sphi 0, %s94
      %s98 = sphi 0, %s97
      %s114 = sphi 0, %s98
    $region4: #{tpu_custom_call.1} parent=1 // loop_header_branch
      %19 = sbr.rel (%p17) target = $region8
    $region5: #{tpu_custom_call.1} parent=1 // loop_body
      %s21 = ssub.s32 %s16, 1
      %s22 = ssub.s32 %s16, 2
      %s23 = sadd.s32 %s16, 1
      %s24 = ssub.s32 %s16, %s23
      %p25 = scmp.eq.s32.totalorder %s24, 0
      %s27 = sadd.s32 %s26, 1
      %s28 = scalar_select %p25, %s26, %s27
      %p31 = pneg %p25
      %p32 = scmp.eq.s32.totalorder %s16, 1
      %p33 = por %p31, %p32
      %p34 = scmp.ne.s32.totalorder %s26, %s29
      %p35 = scmp.eq.s32.totalorder %s16, 0
      %p36 = por %p34, %p35
      %p37 = scmp.ne.s32.totalorder %s26, %s29
      %p38 = scmp.eq.s32.totalorder %s21, 1
      %p39 = por %p37, %p38
      %p40 = scmp.ne.s32.totalorder %s29, %s30
      %p41 = scmp.eq.s32.totalorder %s21, 0
      %p42 = por %p40, %p41
      %p43 = scmp.ne.s32.totalorder %s29, %s30
      %p44 = scmp.eq.s32.totalorder %s22, 1
      %p45 = por %p43, %p44
      %p47 = scmp.ne.s32.totalorder %s30, %s46
      %p48 = scmp.eq.s32.totalorder %s22, 0
      %p49 = por %p47, %p48
      %s51 = sadd.s32 %s50, 1
      %p54 = scmp.eq.s32.totalorder %s16, 1
      %p55 = scmp.ne.s32.totalorder %s50, %s52
      %p56 = scmp.eq.s32.totalorder %s16, 0
      %p57 = por %p55, %p56
      %p58 = scmp.ne.s32.totalorder %s50, %s52
      %p59 = scmp.eq.s32.totalorder %s21, 1
      %p60 = por %p58, %p59
      %p61 = scmp.ne.s32.totalorder %s52, %s53
      %p62 = scmp.eq.s32.totalorder %s21, 0
      %p63 = por %p61, %p62
      %p64 = scmp.ne.s32.totalorder %s52, %s53
      %p65 = scmp.eq.s32.totalorder %s22, 1
      %p66 = por %p64, %p65
      %p68 = scmp.ne.s32.totalorder %s53, %s67
      %p69 = scmp.eq.s32.totalorder %s22, 0
      %p70 = por %p68, %p69
      %s72 = sadd.s32 %s71, 1
      %p75 = scmp.eq.s32.totalorder %s16, 1
      %p76 = scmp.ne.s32.totalorder %s71, %s73
      %p77 = scmp.eq.s32.totalorder %s16, 0
      %p78 = por %p76, %p77
      %p79 = scmp.ne.s32.totalorder %s71, %s73
      %p80 = scmp.eq.s32.totalorder %s21, 1
      %p81 = por %p79, %p80
      %p82 = scmp.ne.s32.totalorder %s73, %s74
      %p83 = scmp.eq.s32.totalorder %s21, 0
      %p84 = por %p82, %p83
      %p85 = scmp.ne.s32.totalorder %s73, %s74
      %p86 = scmp.eq.s32.totalorder %s22, 1
      %p87 = por %p85, %p86
      %p89 = scmp.ne.s32.totalorder %s74, %s88
      %p90 = scmp.eq.s32.totalorder %s22, 0
      %p91 = por %p89, %p90
      %s92 = ssub.s32 %s16, %s23
      %p93 = scmp.eq.s32.totalorder %s92, 0
      %s95 = sadd.s32 %s94, 1
      %s96 = scalar_select %p93, %s94, %s95
      %p99 = pneg %p93
      %p100 = scmp.eq.s32.totalorder %s16, 1
      %p101 = por %p99, %p100
      %p102 = scmp.ne.s32.totalorder %s94, %s97
      %p103 = scmp.eq.s32.totalorder %s16, 0
      %p104 = por %p102, %p103
      %p105 = scmp.ne.s32.totalorder %s94, %s97
      %p106 = scmp.eq.s32.totalorder %s21, 1
      %p107 = por %p105, %p106
      %p108 = scmp.ne.s32.totalorder %s97, %s98
      %p109 = scmp.eq.s32.totalorder %s21, 0
      %p110 = por %p108, %p109
      %p111 = scmp.ne.s32.totalorder %s97, %s98
      %p112 = scmp.eq.s32.totalorder %s22, 1
      %p113 = por %p111, %p112
      %p115 = scmp.ne.s32.totalorder %s98, %s114
      %p116 = scmp.eq.s32.totalorder %s22, 0
      %p117 = por %p115, %p116
      %p118 = scmp.le.s32.totalorder 1, %s16
      %p119 = scmp.lt.s32.totalorder %s16, 3
      %p120 = pnand %p118, %p119
      %p121 = pneg %p120
      // Predicated region
      $region9: #{tpu_custom_call.1} parent=5 // pred_check
        _
      $region10: #{tpu_custom_call.1} parent=5 // pred_check_branch
        %123 = sbr.rel (%p120) target = $region12
      $region11: #{tpu_custom_call.1} parent=5 // pred_region
        %s124 = ssub.s32 %s16, 1
        // Predicated region
        $region13: #{tpu_custom_call.1} parent=11 // pred_check
          %p125 = pneg %p63
        $region14: #{tpu_custom_call.1} parent=11 // pred_check_branch
          %127 = sbr.rel (%p125) target = $region16
        $region15: #{tpu_custom_call.1} parent=11 // pred_region
          %s129 = ssub.s32 1024, 1024
          %130 = vsyncadd [#allocation6], %s129
          %s131 = sshll.u32 [#allocation5], 4
          %s132 = int_to_ptr.vmem [resolvable:$true] %s131
          %137 = dma.hbm_to_vmem [thread:$0]  %s1, 1024, %s132, [#allocation6], 128, 128, 8
        $region16: #{tpu_custom_call.1} parent=11 // pred_fallthru
          _
        // Predicated region
        $region17: #{tpu_custom_call.1} parent=11 // pred_check
          %p138 = pneg %p84
        $region18: #{tpu_custom_call.1} parent=11 // pred_check_branch
          %140 = sbr.rel (%p138) target = $region20
        $region19: #{tpu_custom_call.1} parent=11 // pred_region
          _
        $region20: #{tpu_custom_call.1} parent=11 // pred_fallthru
          _
      $region12: #{tpu_custom_call.1} parent=5 // pred_fallthru
        _
      %p141 = scmp.lt.s32.totalorder %s16, 2
      // Predicated region
      $region21: #{tpu_custom_call.1} parent=5 // pred_check
        %p142 = pneg %p141
      $region22: #{tpu_custom_call.1} parent=5 // pred_check_branch
        %144 = sbr.rel (%p142) target = $region24
      $region23: #{tpu_custom_call.1} parent=5 // pred_region
        // Predicated region
        $region25: #{tpu_custom_call.1} parent=23 // pred_check
          %p145 = pneg %p36
        $region26: #{tpu_custom_call.1} parent=23 // pred_check_branch
          %147 = sbr.rel (%p145) target = $region28
        $region27: #{tpu_custom_call.1} parent=23 // pred_region
          %s148 = sand.u32 %s26, 1
          %s149 = scalar_lea.sflag [#allocation3], %s148
          %s150 = sand.u32 %s26, 1
          %s151 = smul.addr %s150, 8
          %s152 = scalar_lea.vmem [#allocation2], %s151
          %s154 = ssub.s32 128, 128
          %155 = vsyncadd %s149, %s154
          %s156 = smul.addr %s16, 128
          %s157 = scalar_lea.hbm %s0, %s156
          %s159 = sshll.u32 %s152, 4
          %s160 = int_to_ptr.vmem [resolvable:$true] %s159
          %162 = dma.hbm_to_vmem [thread:$0]  %s157, 128, %s160, %s149
        $region28: #{tpu_custom_call.1} parent=23 // pred_fallthru
          _
      $region24: #{tpu_custom_call.1} parent=5 // pred_fallthru
        _
      %p163 = scmp.le.s32.totalorder 1, %s16
      %p164 = scmp.lt.s32.totalorder %s16, 3
      %p165 = pnand %p163, %p164
      %p166 = pneg %p165
      // Predicated region
      $region29: #{tpu_custom_call.1} parent=5 // pred_check
        _
      $region30: #{tpu_custom_call.1} parent=5 // pred_check_branch
        %168 = sbr.rel (%p165) target = $region32
      $region31: #{tpu_custom_call.1} parent=5 // pred_region
        %s169 = ssub.s32 %s16, 1
        %s170 = sand.u32 %s29, 1
        %s171 = scalar_lea.sflag [#allocation3], %s170
        %s172 = sand.u32 %s29, 1
        %s173 = smul.addr %s172, 8
        %s174 = scalar_lea.vmem [#allocation2], %s173
        // Predicated region
        $region33: #{tpu_custom_call.1} parent=31 // pred_check
          %p175 = pneg %p42
        $region34: #{tpu_custom_call.1} parent=31 // pred_check_branch
          %177 = sbr.rel (%p175) target = $region36
        $region35: #{tpu_custom_call.1} parent=31 // pred_region
          %178 = dma.done %s171, 128
        $region36: #{tpu_custom_call.1} parent=31 // pred_fallthru
          _
        // Predicated region
        $region37: #{tpu_custom_call.1} parent=31 // pred_check
          %p179 = pneg %p63
        $region38: #{tpu_custom_call.1} parent=31 // pred_check_branch
          %181 = sbr.rel (%p179) target = $region40
        $region39: #{tpu_custom_call.1} parent=31 // pred_region
          %182 = dma.done [#allocation6], 1024
        $region40: #{tpu_custom_call.1} parent=31 // pred_fallthru
          _
        %s183 = sand.u32 %s29, 1
        %s184 = scalar_lea.sflag [#allocation3], %s183
        %s185 = sand.u32 %s29, 1
        %s186 = smul.addr %s185, 8
        %s187 = scalar_lea.vmem [#allocation2], %s186
        %p188 = pneg %p42
        %p189 = pneg %p39
        %p190 = pneg %p63
        %p191 = pneg %p60
        %p192 = pneg %p84
        %p193 = pneg %p81
        %p194 = pneg %p110
        %p195 = pneg %p107
        %s196 = sand.u32 %s97, 1
        %s197 = scalar_lea.sflag [#allocation4], %s196
        %s198 = sand.u32 %s97, 1
        %s199 = smul.addr %s198, 8
        %s200 = scalar_lea.vmem [#allocation7], %s199
        %v202 = vld [vmem:[%s174] sm:$0xff]
        %v203 = vpack.c.bf16 %v202, %v202
        %v204 = vld [vmem:[#allocation5] sm:$0xff]
        %v205 = vld [vmem:[#allocation5 + $0x8] sm:$0xff]
        %v206 = vld [vmem:[#allocation5 + $0x10] sm:$0xff]
        %v207 = vld [vmem:[#allocation5 + $0x18] sm:$0xff]
        %v208 = vld [vmem:[%s2] sm:$0x3]
        %v210 = vlaneseq
        %v211 = vshrl.u32 %v210, 7
        %v212 = vsub.s32 0, %v211
        %v213 = vrot.slane %v208, %v212
        %v214 = vlaneseq
        %v215 = vshrl.u32 %v214, 7
        %v216 = vsub.s32 1, %v215
        %v217 = vrot.slane %v208, %v216
        %v224 = vunpack.c.l.b16 %v204
        %v225 = vunpack.c.h.b16 %v204
        %v226 = vunpack.c.l.b16 %v205
        %v227 = vunpack.c.h.b16 %v205
        %v228 = vunpack.c.l.b16 %v206
        %v229 = vunpack.c.h.b16 %v206
        %v230 = vunpack.c.l.b16 %v207
        %v231 = vunpack.c.h.b16 %v207
        %v232 = vpack.c.b16 %v226, %v224
        %v233 = vpack.c.b16 %v227, %v225
        %v234 = vpack.c.b16 %v230, %v228
        %v235 = vpack.c.b16 %v231, %v229
        %vm240 = vcmask 261120
        %v242 = vsel %vm240, %v203, 0
        %244 = vmatprep.subr.bf16.mxu0 %v233
        %245 = vmatpush1.bf16.msra.mxu0 %v232
        %246 = vmatprep.subr.bf16.mxu0 %v235
        %247 = vmatpush1.bf16.msra.mxu0 %v234
        %248 = vmatprep.subr.bf16.mxu0 0
        %249 = vmatpush1.bf16.msra.mxu0 0
        %250 = vmatprep.subr.bf16.mxu0 0
        %251 = vmatpush1.bf16.msra.mxu0 0
        %252 = vmatprep.subr.bf16.mxu0 0
        %253 = vmatpush1.bf16.msra.mxu0 0
        %254 = vmatprep.subr.bf16.mxu0 0
        %255 = vmatpush1.bf16.msra.mxu0 0
        %256 = vmatprep.subr.bf16.mxu0 0
        %257 = vmatpush1.bf16.msra.mxu0 0
        %258 = vmatprep.subr.bf16.mxu0 0
        %259 = vmatpush1.bf16.msra.mxu0 0
        %260 = vmatprep.subr.bf16.mxu0 0
        %261 = vmatpush1.bf16.msra.mxu0 0
        %262 = vmatprep.subr.bf16.mxu0 0
        %263 = vmatpush1.bf16.msra.mxu0 0
        %264 = vmatprep.subr.bf16.mxu0 0
        %265 = vmatpush1.bf16.msra.mxu0 0
        %266 = vmatprep.subr.bf16.mxu0 0
        %267 = vmatpush1.bf16.msra.mxu0 0
        %268 = vmatprep.subr.bf16.mxu0 0
        %269 = vmatpush1.bf16.msra.mxu0 0
        %270 = vmatprep.subr.bf16.mxu0 0
        %271 = vmatpush1.bf16.msra.mxu0 0
        %272 = vmatprep.subr.bf16.mxu0 0
        %273 = vmatpush1.bf16.msra.mxu0 0
        %274 = vmatprep.subr.bf16.mxu0 0
        %275 = vmatpush1.bf16.msra.mxu0 0
        %276 = vmatprep.mubr.bf16.mxu0 0
        %277 = vmatmul.mubr.bf16.gmra.mrb[0].mxu0 %v242
        %v278 = vpop.f32.mrb[0].mxu0
        %v279 = vadd.f32 %v213, %v278
        %v280 = vpop.f32.mrb[0].mxu0
        %v281 = vadd.f32 %v217, %v280
        %v282 = vpop.f32.mrb[0].mxu0
        %v283 = vpop.f32.mrb[0].mxu0
        %284 = vdwg.mxu0
        %v285 = vmax.f32 %v279, 0.0
        %v286 = vsub.f32 0.0, %v281
        %v287 = vmul.f32 %v286, 1.442695
        %v288 = vpow.pop %v287
        %v289 = vadd.f32 %v288, 1.0
        %v290 = vrcp.pop %v289
        %v291 = vsub.f32 %v285, %v202
        %v292 = vmul.f32 %v290, %v291
        %v293 = vadd.f32 %v292, %v202
        %v294 = vpack.c.bf16 %v293, %v293
        %s295 = scalar_lea.vmem [#allocation5], 32
        %v296 = vld [vmem:[%s295] sm:$0xff]
        %v297 = vld [vmem:[%s295 + $0x8] sm:$0xff]
        %v298 = vld [vmem:[%s295 + $0x10] sm:$0xff]
        %v299 = vld [vmem:[%s295 + $0x18] sm:$0xff]
        %s300 = scalar_lea.vmem %s2, 2
        %v301 = vld [vmem:[%s300] sm:$0x3]
        %v303 = vlaneseq
        %v304 = vshrl.u32 %v303, 7
        %v305 = vsub.s32 0, %v304
        %v306 = vrot.slane %v301, %v305
        %v307 = vlaneseq
        %v308 = vshrl.u32 %v307, 7
        %v309 = vsub.s32 1, %v308
        %v310 = vrot.slane %v301, %v309
        %v317 = vunpack.c.l.b16 %v296
        %v318 = vunpack.c.h.b16 %v296
        %v319 = vunpack.c.l.b16 %v297
        %v320 = vunpack.c.h.b16 %v297
        %v321 = vunpack.c.l.b16 %v298
        %v322 = vunpack.c.h.b16 %v298
        %v323 = vunpack.c.l.b16 %v299
        %v324 = vunpack.c.h.b16 %v299
        %v325 = vpack.c.b16 %v319, %v317
        %v326 = vpack.c.b16 %v320, %v318
        %v327 = vpack.c.b16 %v323, %v321
        %v328 = vpack.c.b16 %v324, %v322
        %v334 = vsel %vm240, %v294, 0
        %336 = vmatprep.subr.bf16.mxu0 %v326
        %337 = vmatpush1.bf16.msra.mxu0 %v325
        %338 = vmatprep.subr.bf16.mxu0 %v328
        %339 = vmatpush1.bf16.msra.mxu0 %v327
        %340 = vmatprep.subr.bf16.mxu0 0
        %341 = vmatpush1.bf16.msra.mxu0 0
        %342 = vmatprep.subr.bf16.mxu0 0
        %343 = vmatpush1.bf16.msra.mxu0 0
        %344 = vmatprep.subr.bf16.mxu0 0
        %345 = vmatpush1.bf16.msra.mxu0 0
        %346 = vmatprep.subr.bf16.mxu0 0
        %347 = vmatpush1.bf16.msra.mxu0 0
        %348 = vmatprep.subr.bf16.mxu0 0
        %349 = vmatpush1.bf16.msra.mxu0 0
        %350 = vmatprep.subr.bf16.mxu0 0
        %351 = vmatpush1.bf16.msra.mxu0 0
        %352 = vmatprep.subr.bf16.mxu0 0
        %353 = vmatpush1.bf16.msra.mxu0 0
        %354 = vmatprep.subr.bf16.mxu0 0
        %355 = vmatpush1.bf16.msra.mxu0 0
        %356 = vmatprep.subr.bf16.mxu0 0
        %357 = vmatpush1.bf16.msra.mxu0 0
        %358 = vmatprep.subr.bf16.mxu0 0
        %359 = vmatpush1.bf16.msra.mxu0 0
        %360 = vmatprep.subr.bf16.mxu0 0
        %361 = vmatpush1.bf16.msra.mxu0 0
        %362 = vmatprep.subr.bf16.mxu0 0
        %363 = vmatpush1.bf16.msra.mxu0 0
        %364 = vmatprep.subr.bf16.mxu0 0
        %365 = vmatpush1.bf16.msra.mxu0 0
        %366 = vmatprep.subr.bf16.mxu0 0
        %367 = vmatpush1.bf16.msra.mxu0 0
        %368 = vmatprep.mubr.bf16.mxu0 0
        %369 = vmatmul.mubr.bf16.gmra.mrb[0].mxu0 %v334
        %v370 = vpop.f32.mrb[0].mxu0
        %v371 = vadd.f32 %v306, %v370
        %v372 = vpop.f32.mrb[0].mxu0
        %v373 = vadd.f32 %v310, %v372
        %v374 = vpop.f32.mrb[0].mxu0
        %v375 = vpop.f32.mrb[0].mxu0
        %376 = vdwg.mxu0
        %v377 = vmax.f32 %v371, 0.0
        %v378 = vsub.f32 0.0, %v373
        %v379 = vmul.f32 %v378, 1.442695
        %v380 = vpow.pop %v379
        %v381 = vadd.f32 %v380, 1.0
        %v382 = vrcp.pop %v381
        %v383 = vsub.f32 %v377, %v293
        %v384 = vmul.f32 %v382, %v383
        %v385 = vadd.f32 %v384, %v293
        %386 = vst.msk [vmem:[%s200] sm:$0xff] %vm240, %v385
        %s387 = sand.u32 %s97, 1
        %s388 = scalar_lea.sflag [#allocation4], %s387
        %s389 = sand.u32 %s97, 1
        %s390 = smul.addr %s389, 8
        %s391 = scalar_lea.vmem [#allocation7], %s390
        // Predicated region
        $region41: #{tpu_custom_call.1} parent=31 // pred_check
          %p392 = pneg %p107
        $region42: #{tpu_custom_call.1} parent=31 // pred_check_branch
          %394 = sbr.rel (%p392) target = $region44
        $region43: #{tpu_custom_call.1} parent=31 // pred_region
          %s396 = ssub.s32 128, 128
          %397 = vsyncadd %s388, %s396
          %s398 = smul.addr %s21, 128
          %s399 = scalar_lea.hbm %s3, %s398
          %s401 = sshll.u32 %s391, 4
          %s402 = int_to_ptr.vmem [resolvable:$true] %s401
          %404 = dma.vmem_to_hbm [thread:$0]  %s402, 128, %s399, %s388
        $region44: #{tpu_custom_call.1} parent=31 // pred_fallthru
          _
      $region32: #{tpu_custom_call.1} parent=5 // pred_fallthru
        _
      %p405 = scmp.le.s32.totalorder 2, %s16
      // Predicated region
      $region45: #{tpu_custom_call.1} parent=5 // pred_check
        %p406 = pneg %p405
      $region46: #{tpu_custom_call.1} parent=5 // pred_check_branch
        %408 = sbr.rel (%p406) target = $region48
      $region47: #{tpu_custom_call.1} parent=5 // pred_region
        %s409 = ssub.s32 %s16, 2
        // Predicated region
        $region49: #{tpu_custom_call.1} parent=47 // pred_check
          %p410 = pneg %p113
        $region50: #{tpu_custom_call.1} parent=47 // pred_check_branch
          %412 = sbr.rel (%p410) target = $region52
        $region51: #{tpu_custom_call.1} parent=47 // pred_region
          %s413 = sand.u32 %s98, 1
          %s414 = scalar_lea.sflag [#allocation4], %s413
          %s415 = sand.u32 %s98, 1
          %s416 = smul.addr %s415, 8
          %s417 = scalar_lea.vmem [#allocation7], %s416
          %418 = dma.done %s414, 128
        $region52: #{tpu_custom_call.1} parent=47 // pred_fallthru
          _
      $region48: #{tpu_custom_call.1} parent=5 // pred_fallthru
        _
    $region6: #{tpu_custom_call.1} parent=1 // loop_footer
      %s20 = sadd.s32 1, %s16
    $region7: #{tpu_custom_call.1} parent=1 // loop_footer_branch
      %15 = sbr.rel target = $region3
    $region8: #{tpu_custom_call.1} parent=1 // loop_exit
      _
    %419 = vsyncpa [#allocation3], 1
    %s420 = scalar_lea.sflag [#allocation3], 1
    %421 = vsyncpa %s420, 1
    %422 = vsyncpa [#allocation6], 1
    %423 = vsyncpa [#allocation4], 1
    %s424 = scalar_lea.sflag [#allocation4], 1
    %425 = vsyncpa %s424, 1

</llo_original>
